<compile_context>
chip_gen: v7x
topology: tpu7x:2x2x1
jax: 0.10.0
libtpu: 0.0.40
codegen_flags: <defaults>
</compile_context>

<pallas_src>
import functools
import math

import jax
import jax.numpy as jnp
from jax.experimental import pallas as pl
from jax.experimental.pallas import tpu as pltpu


def basic_block_kernel(x_ref, w1_ref, w2_ref, o_ref, *, L, fuse_taps):
    # x_ref: (BR, Cin)  w1_ref: (3*Cin, Cp)  w2_ref: (3*Cp, Cp)  o_ref: (BR, Cp)
    BR, Cin = x_ref.shape

    # Row position inside its own sequence (each block holds whole sequences,
    # so block row 0 is always a sequence start).  The {0,1} masks implement
    # padding=1 and also kill the cross-sequence wrap of the rolls.
    pos = jax.lax.broadcasted_iota(jnp.int32, (BR, 1), 0) % L
    cdt = x_ref.dtype
    mask_l = (pos != 0).astype(cdt)        # a valid l-1 neighbour exists
    mask_r = (pos != (L - 1)).astype(cdt)  # a valid l+1 neighbour exists

    def conv3(v, w_ref):
        # out[l] = v[l-1] @ w[0] + v[l] @ w[1] + v[l+1] @ w[2]
        C = v.shape[1]
        v_left = pltpu.roll(v, 1, axis=0) * mask_l         # row l holds v[l-1]
        v_right = pltpu.roll(v, BR - 1, axis=0) * mask_r   # row l holds v[l+1]
        if fuse_taps:
            # Single MXU matmul, K = 3*C (lane-aligned channels only).
            vcat = jnp.concatenate([v_left, v, v_right], axis=-1)
            return jnp.dot(vcat, w_ref[...], preferred_element_type=jnp.float32)
        acc = jnp.dot(v, w_ref[pl.ds(C, C), :], preferred_element_type=jnp.float32)
        acc = acc + jnp.dot(v_left, w_ref[pl.ds(0, C), :],
                            preferred_element_type=jnp.float32)
        acc = acc + jnp.dot(v_right, w_ref[pl.ds(2 * C, C), :],
                            preferred_element_type=jnp.float32)
        return acc  # f32

    x = x_ref[...]
    h = jnp.maximum(conv3(x, w1_ref), 0.0)      # conv1 + ReLU (f32)
    out = conv3(h.astype(cdt), w2_ref)          # conv2 (MXU operands in compute dtype)
    # Residual add in f32.  Note: with compute_dtype=bf16 the skip path uses the
    # bf16-cast x (tolerated; feed original-dtype x separately if bit-accuracy
    # of the identity path matters).
    out = out + x.astype(jnp.float32)
    o_ref[...] = jnp.maximum(out, 0.0).astype(o_ref.dtype)


def basic_block_pallas(x_nlc, w1_kio, w2_kio, *, n_tile=None, compute_dtype=None,
                       pad_channels=False):
    """x_nlc: (N, L, Cin); w*_kio: (3, Cin, Cout). Returns (N, L, Cout) in x dtype."""
    N, L, Cin = x_nlc.shape
    k1, cin_w, Cp = w1_kio.shape
    assert k1 == 3 and cin_w == Cin
    assert w2_kio.shape == (3, Cp, Cp)
    # stride=1 and downsample=None imply the residual requires inplanes == planes.
    assert Cin == Cp, "BasicBlock with downsample=None requires inplanes == planes"

    out_dtype = x_nlc.dtype
    compute_dtype = jnp.dtype(compute_dtype) if compute_dtype is not None \
        else jnp.dtype(x_nlc.dtype)

    # Optional lane-dense channel padding (C -> multiple of 128): unmasked vst
    # stores and full MXU N-fill.  For very small C at realistic L, a
    # channels-on-sublanes / L-on-lanes layout would avoid the extra HBM bytes.
    # TODO(synk): add the (n_tile, C, L) layout variant for C << 128.
    if pad_channels and Cp % 128 != 0:
        c_pad = ((Cp + 127) // 128) * 128 - Cp
        x_nlc = jnp.pad(x_nlc, ((0, 0), (0, 0), (0, c_pad)))
        w1_kio = jnp.pad(w1_kio, ((0, 0), (0, c_pad), (0, c_pad)))
        w2_kio = jnp.pad(w2_kio, ((0, 0), (0, c_pad), (0, c_pad)))
    Cw = x_nlc.shape[2]                         # working channel width

    # bf16 operands are worthwhile on v5e/v6e/v7x alike (kernel is HBM-bound);
    # accumulation / residual / ReLU remain f32 inside the kernel.
    x_in = x_nlc.astype(compute_dtype)
    w1 = w1_kio.astype(compute_dtype).reshape(3 * Cw, Cw)   # tap-major, flat K
    w2 = w2_kio.astype(compute_dtype).reshape(3 * Cw, Cw)

    fuse_taps = (Cw % 128 == 0)                 # single-matmul path when lane aligned

    cd = jnp.dtype(compute_dtype).itemsize
    od = jnp.dtype(out_dtype).itemsize

    # Generation-aware VMEM budget (v7x has 64 MiB per TC vs 128 MiB on v5e/v6e).
    try:
        vmem_cap = int(getattr(pltpu.get_tpu_info(), "vmem_capacity_bytes", 64 << 20))
    except Exception:  # be conservative if the query is unavailable
        vmem_cap = 64 << 20

    # Rough per-row VMEM estimate: double-buffered I/O tiles + in-kernel temps.
    per_row_bytes = (2 * Cw * cd     # input tile (x2 buffers)
                     + 2 * Cw * od   # output tile (x2 buffers)
                     + 5 * Cw * cd   # rolled/masked copies (+ optional 3C concat)
                     + 3 * Cw * 4)   # f32 acc / h / out temporaries
    w_bytes = 2 * (w1.size + w2.size) * cd

    seq_unit = max(1, 8 // math.gcd(L, 8))      # sequences/block so rows % 8 == 0

    if n_tile is None:
        vmem_budget = int(vmem_cap * 0.55)
        rows_by_vmem = (vmem_budget - w_bytes) // per_row_bytes
        rows_by_input = (16 << 20) // max(1, Cw * cd)   # ~16 MiB of input per step
        rows = max(L, min(rows_by_vmem, rows_by_input))
        n_tile = max(1, rows // L)
        if N >= 2:
            # Keep >= 2 grid steps: both v7x TensorCores busy, DMA pipeline live.
            n_tile = min(n_tile, (N + 1) // 2)
        n_tile = min(n_tile, N)
    # Whole sequences per block; flattened row-block stays 8-sublane aligned.
    n_tile = max(seq_unit, ((n_tile + seq_unit - 1) // seq_unit) * seq_unit)

    # Drop the "n_tile divides N" constraint: zero-pad the batch, slice after.
    N_pad = ((N + n_tile - 1) // n_tile) * n_tile
    if N_pad != N:
        x_in = jnp.pad(x_in, ((0, N_pad - N), (0, 0), (0, 0)))

    BR = n_tile * L
    grid = (N_pad // n_tile,)
    x_flat = x_in.reshape(N_pad * L, Cw)        # wrapper-side, metadata-only collapse
    # TODO(synk): add an L-axis grid with a 1-row halo (carried boundary rows) for
    # sequences so long that a single (L, C) tile exceeds VMEM even at n_tile=1.

    est_bytes = BR * per_row_bytes + w_bytes
    vmem_limit_bytes = int(max(16 << 20,
                               min(vmem_cap - (8 << 20),
                                   max(32 << 20, 2 * est_bytes))))

    flops = int(12 * N_pad * L * Cw * Cw + 4 * N_pad * L * Cw)
    bytes_accessed = int(x_flat.size * cd + (w1.size + w2.size) * cd
                         + N_pad * L * Cw * od)

    kernel = functools.partial(basic_block_kernel, L=L, fuse_taps=fuse_taps)

    out_flat = pl.pallas_call(
        kernel,
        out_shape=jax.ShapeDtypeStruct((N_pad * L, Cw), out_dtype),
        grid=grid,
        in_specs=[
            pl.BlockSpec((BR, Cw), lambda i: (i, 0)),
            pl.BlockSpec((3 * Cw, Cw), lambda i: (0, 0)),   # weights stay resident
            pl.BlockSpec((3 * Cw, Cw), lambda i: (0, 0)),
        ],
        out_specs=pl.BlockSpec((BR, Cw), lambda i: (i, 0)),
        compiler_params=pltpu.CompilerParams(
            dimension_semantics=("parallel",),
            vmem_limit_bytes=vmem_limit_bytes),
        cost_estimate=pl.CostEstimate(flops=flops, transcendentals=0,
                                      bytes_accessed=bytes_accessed),
    )(x_flat, w1, w2)

    out = out_flat.reshape(N_pad, L, Cw)[:N, :, :Cp]        # drop batch/channel pad
    return out


def _conv1d_ref(x_ncl, w_oik):
    # Reference Conv1d (NCL, OIK layout), padding=1, stride=1, no bias.
    return jax.lax.conv_general_dilated(
        x_ncl, w_oik, window_strides=(1,), padding=((1, 1),),
        dimension_numbers=('NCH', 'OIH', 'NCH'))


def basic_block_ref(x_ncl, w1_oik, w2_oik):
    out = jnp.maximum(_conv1d_ref(x_ncl, w1_oik), 0.0)
    out = _conv1d_ref(out, w2_oik)
    out = out + x_ncl
    return jnp.maximum(out, 0.0)


if __name__ == "__main__":
    key = jax.random.PRNGKey(0)
    kx, k1, k2 = jax.random.split(key, 3)

    N, C, L = 2, 4, 16          # inplanes == planes == 4, stride=1, downsample=None
    x_ncl = jax.random.normal(kx, (N, C, L), dtype=jnp.float32)
    # PyTorch Conv1d weight layout: (out_channels, in_channels, kernel_size=3)
    w1_oik = jax.random.normal(k1, (C, C, 3), dtype=jnp.float32) * 0.1
    w2_oik = jax.random.normal(k2, (C, C, 3), dtype=jnp.float32) * 0.1

    # Rearrange for the kernel: NCL -> NLC, (O, I, K) -> (K, I, O)
    x_nlc = jnp.transpose(x_ncl, (0, 2, 1))
    w1_kio = jnp.transpose(w1_oik, (2, 1, 0))
    w2_kio = jnp.transpose(w2_oik, (2, 1, 0))

    ref = basic_block_ref(x_ncl, w1_oik, w2_oik)

    def check(out_nlc, tol, tag):
        out_ncl = jnp.transpose(out_nlc, (0, 2, 1))
        assert out_ncl.shape == ref.shape
        assert jnp.allclose(out_ncl, ref, atol=tol, rtol=tol), \
            f"mismatch vs reference ({tag})"

    # f32, explicit batch tiles (3-dot path since C=4 is not lane aligned).
    for n_tile in (1, 2):
        out = jax.block_until_ready(
            basic_block_pallas(x_nlc, w1_kio, w2_kio, n_tile=n_tile))
        check(out, 1e-4, f"f32 n_tile={n_tile}")

    # f32, auto tiling + channel padding to 128 lanes (fused single-matmul taps,
    # lane-dense unmasked stores).
    out = jax.block_until_ready(
        basic_block_pallas(x_nlc, w1_kio, w2_kio, pad_channels=True))
    check(out, 1e-4, "f32 pad_channels")

    # bf16 MXU operands (worthwhile on v5e/v6e/v7x; kernel is HBM-bound) with
    # f32 accumulation and f32 residual/ReLU.
    out = jax.block_until_ready(
        basic_block_pallas(x_nlc, w1_kio, w2_kio,
                           compute_dtype=jnp.bfloat16, pad_channels=True))
    check(out, 5e-2, "bf16 pad_channels")

    print("KERNEL_OK")
</pallas_src>

<mosaic_0001>
module attributes {stable_mosaic.version = 11 : i64} {
  func.func @basic_block_kernel(%arg0: i32, %arg1: memref<16x4xf32, #tpu.memory_space<vmem>>, %arg2: memref<12x4xf32, #tpu.memory_space<vmem>>, %arg3: memref<12x4xf32, #tpu.memory_space<vmem>>, %arg4: memref<16x4xf32, #tpu.memory_space<vmem>>) attributes {dimension_semantics = [#tpu.dimension_semantics<parallel>], iteration_bounds = array<i64: 2>, scalar_prefetch = 0 : i64, scratch_operands = 0 : i64, tpu.core_type = #tpu.core_type<tc>, window_params = [{transform_indices = @transform_0, window_bounds = array<i64: 16, 4>}, {pipeline_mode = #tpu.pipeline_mode<synchronous>, transform_indices = @transform_1, window_bounds = array<i64: 12, 4>}, {pipeline_mode = #tpu.pipeline_mode<synchronous>, transform_indices = @transform_2, window_bounds = array<i64: 12, 4>}, {transform_indices = @transform_3, window_bounds = array<i64: 16, 4>}]} {
    %0 = tpu.iota {dimensions = array<i32: 0>} : vector<16x1xi32>
    %c16_i32 = arith.constant 16 : i32
    %c0_i32 = arith.constant 0 : i32
    %1 = arith.cmpi eq, %c16_i32, %c0_i32 : i32
    %c1_i32 = arith.constant 1 : i32
    %2 = arith.select %1, %c1_i32, %c16_i32 : i32
    %3 = vector.broadcast %2 : i32 to vector<16x1xi32>
    %4 = arith.remsi %0, %3 : vector<16x1xi32>
    %c0_i32_0 = arith.constant 0 : i32
    %5 = vector.broadcast %c0_i32_0 : i32 to vector<16x1xi32>
    %6 = arith.cmpi ne, %4, %5 : vector<16x1xi32>
    %c0_i32_1 = arith.constant 0 : i32
    %7 = vector.broadcast %c0_i32_1 : i32 to vector<16x1xi32>
    %8 = arith.cmpi slt, %4, %7 : vector<16x1xi32>
    %c0_i32_2 = arith.constant 0 : i32
    %9 = arith.cmpi slt, %2, %c0_i32_2 : i32
    %10 = vector.broadcast %9 : i1 to vector<16x1xi1>
    %11 = vector.broadcast %10 : vector<16x1xi1> to vector<16x1xi1>
    %12 = arith.xori %8, %11 : vector<16x1xi1>
    %13 = arith.andi %12, %6 : vector<16x1xi1>
    %14 = vector.broadcast %2 : i32 to vector<16x1xi32>
    %15 = arith.addi %4, %14 : vector<16x1xi32>
    %16 = arith.select %13, %15, %4 : vector<16x1xi1>, vector<16x1xi32>
    %c0_i32_3 = arith.constant 0 : i32
    %17 = vector.broadcast %c0_i32_3 : i32 to vector<16x1xi32>
    %18 = arith.cmpi ne, %16, %17 : vector<16x1xi32>
    %19 = arith.extui %18 : vector<16x1xi1> to vector<16x1xi32>
    %20 = arith.sitofp %19 : vector<16x1xi32> to vector<16x1xf32>
    %c15_i32 = arith.constant 15 : i32
    %21 = vector.broadcast %c15_i32 : i32 to vector<16x1xi32>
    %22 = arith.cmpi ne, %16, %21 : vector<16x1xi32>
    %23 = arith.extui %22 : vector<16x1xi1> to vector<16x1xi32>
    %24 = arith.sitofp %23 : vector<16x1xi32> to vector<16x1xf32>
    %c0 = arith.constant 0 : index
    %c0_4 = arith.constant 0 : index
    %25 = vector.load %arg1[%c0, %c0_4] : memref<16x4xf32, #tpu.memory_space<vmem>>, vector<16x4xf32>
    %c1_i32_5 = arith.constant 1 : i32
    %26 = tpu.dynamic_rotate %25 by %c1_i32_5 dim 0 : vector<16x4xf32>, i32 -> vector<16x4xf32>
    %27 = vector.broadcast %20 : vector<16x1xf32> to vector<16x4xf32>
    %28 = arith.mulf %26, %27 : vector<16x4xf32>
    %c15_i32_6 = arith.constant 15 : i32
    %29 = tpu.dynamic_rotate %25 by %c15_i32_6 dim 0 : vector<16x4xf32>, i32 -> vector<16x4xf32>
    %30 = vector.broadcast %24 : vector<16x1xf32> to vector<16x4xf32>
    %31 = arith.mulf %29, %30 : vector<16x4xf32>
    %c4 = arith.constant 4 : index
    %c0_7 = arith.constant 0 : index
    %32 = vector.load %arg2[%c4, %c0_7] : memref<12x4xf32, #tpu.memory_space<vmem>>, vector<4x4xf32>
    %cst = arith.constant dense<0.000000e+00> : vector<16x4xf32>
    %33 = tpu.matmul %25, %32, %cst {dimension_numbers = #tpu.dot_dimension_numbers<[1], [0], [0], [1], [0, 0, 1, 1], [], []>} : vector<16x4xf32>, vector<4x4xf32>, vector<16x4xf32> -> vector<16x4xf32>
    %c0_8 = arith.constant 0 : index
    %c0_9 = arith.constant 0 : index
    %34 = vector.load %arg2[%c0_8, %c0_9] : memref<12x4xf32, #tpu.memory_space<vmem>>, vector<4x4xf32>
    %cst_10 = arith.constant dense<0.000000e+00> : vector<16x4xf32>
    %35 = tpu.matmul %28, %34, %cst_10 {dimension_numbers = #tpu.dot_dimension_numbers<[1], [0], [0], [1], [0, 0, 1, 1], [], []>} : vector<16x4xf32>, vector<4x4xf32>, vector<16x4xf32> -> vector<16x4xf32>
    %36 = arith.addf %33, %35 : vector<16x4xf32>
    %c8 = arith.constant 8 : index
    %c0_11 = arith.constant 0 : index
    %37 = vector.load %arg2[%c8, %c0_11] : memref<12x4xf32, #tpu.memory_space<vmem>>, vector<4x4xf32>
    %cst_12 = arith.constant dense<0.000000e+00> : vector<16x4xf32>
    %38 = tpu.matmul %31, %37, %cst_12 {dimension_numbers = #tpu.dot_dimension_numbers<[1], [0], [0], [1], [0, 0, 1, 1], [], []>} : vector<16x4xf32>, vector<4x4xf32>, vector<16x4xf32> -> vector<16x4xf32>
    %39 = arith.addf %36, %38 : vector<16x4xf32>
    %cst_13 = arith.constant 0.000000e+00 : f32
    %40 = vector.broadcast %cst_13 : f32 to vector<16x4xf32>
    %41 = arith.maximumf %39, %40 : vector<16x4xf32>
    %c1_i32_14 = arith.constant 1 : i32
    %42 = tpu.dynamic_rotate %41 by %c1_i32_14 dim 0 : vector<16x4xf32>, i32 -> vector<16x4xf32>
    %43 = vector.broadcast %20 : vector<16x1xf32> to vector<16x4xf32>
    %44 = arith.mulf %42, %43 : vector<16x4xf32>
    %c15_i32_15 = arith.constant 15 : i32
    %45 = tpu.dynamic_rotate %41 by %c15_i32_15 dim 0 : vector<16x4xf32>, i32 -> vector<16x4xf32>
    %46 = vector.broadcast %24 : vector<16x1xf32> to vector<16x4xf32>
    %47 = arith.mulf %45, %46 : vector<16x4xf32>
    %c4_16 = arith.constant 4 : index
    %c0_17 = arith.constant 0 : index
    %48 = vector.load %arg3[%c4_16, %c0_17] : memref<12x4xf32, #tpu.memory_space<vmem>>, vector<4x4xf32>
    %cst_18 = arith.constant dense<0.000000e+00> : vector<16x4xf32>
    %49 = tpu.matmul %41, %48, %cst_18 {dimension_numbers = #tpu.dot_dimension_numbers<[1], [0], [0], [1], [0, 0, 1, 1], [], []>} : vector<16x4xf32>, vector<4x4xf32>, vector<16x4xf32> -> vector<16x4xf32>
    %c0_19 = arith.constant 0 : index
    %c0_20 = arith.constant 0 : index
    %50 = vector.load %arg3[%c0_19, %c0_20] : memref<12x4xf32, #tpu.memory_space<vmem>>, vector<4x4xf32>
    %cst_21 = arith.constant dense<0.000000e+00> : vector<16x4xf32>
    %51 = tpu.matmul %44, %50, %cst_21 {dimension_numbers = #tpu.dot_dimension_numbers<[1], [0], [0], [1], [0, 0, 1, 1], [], []>} : vector<16x4xf32>, vector<4x4xf32>, vector<16x4xf32> -> vector<16x4xf32>
    %52 = arith.addf %49, %51 : vector<16x4xf32>
    %c8_22 = arith.constant 8 : index
    %c0_23 = arith.constant 0 : index
    %53 = vector.load %arg3[%c8_22, %c0_23] : memref<12x4xf32, #tpu.memory_space<vmem>>, vector<4x4xf32>
    %cst_24 = arith.constant dense<0.000000e+00> : vector<16x4xf32>
    %54 = tpu.matmul %47, %53, %cst_24 {dimension_numbers = #tpu.dot_dimension_numbers<[1], [0], [0], [1], [0, 0, 1, 1], [], []>} : vector<16x4xf32>, vector<4x4xf32>, vector<16x4xf32> -> vector<16x4xf32>
    %55 = arith.addf %52, %54 : vector<16x4xf32>
    %56 = arith.addf %55, %25 : vector<16x4xf32>
    %cst_25 = arith.constant 0.000000e+00 : f32
    %57 = vector.broadcast %cst_25 : f32 to vector<16x4xf32>
    %58 = arith.maximumf %56, %57 : vector<16x4xf32>
    %c0_26 = arith.constant 0 : index
    %c0_27 = arith.constant 0 : index
    %59 = vector.load %arg4[%c0_26, %c0_27] : memref<16x4xf32, #tpu.memory_space<vmem>>, vector<16x4xf32>
    tpu.vector_store %arg4[%c0_26, %c0_27], %58 {strides = array<i32>} : memref<16x4xf32, #tpu.memory_space<vmem>>, vector<16x4xf32>,
    return
  }
  func.func @transform_0(%arg0: i32) -> (i32, i32) {
    %c0_i32 = arith.constant 0 : i32
    %c0_i32_0 = arith.constant 0 : i32
    return %arg0, %c0_i32 : i32, i32
  }
  func.func @transform_1(%arg0: i32) -> (i32, i32) {
    %c0_i32 = arith.constant 0 : i32
    %c0_i32_0 = arith.constant 0 : i32
    %c0_i32_1 = arith.constant 0 : i32
    return %c0_i32, %c0_i32_0 : i32, i32
  }
  func.func @transform_2(%arg0: i32) -> (i32, i32) {
    %c0_i32 = arith.constant 0 : i32
    %c0_i32_0 = arith.constant 0 : i32
    %c0_i32_1 = arith.constant 0 : i32
    return %c0_i32, %c0_i32_0 : i32, i32
  }
  func.func @transform_3(%arg0: i32) -> (i32, i32) {
    %c0_i32 = arith.constant 0 : i32
    %c0_i32_0 = arith.constant 0 : i32
    return %arg0, %c0_i32 : i32, i32
  }
}

</mosaic_0001>

<llo_original>
// kernel: tpu_custom_call.1
$region0: #{tpu_custom_call.1}
  #allocation0 [shape = 'u32[]', space=smem, size = 0x4, offset = 0x4, fixed_abs, tag = 'smem constant byte address 0x4 - core index']
  #allocation1 [shape = 'u32[144,128]{1,0:T(1,128)}', space=vmem, size = 0x12000, scoped, tag = 'internal scratch']
  %s0 = inlined_call_operand.vmem [shape: f32[32,4], index: 0, kind: input, shape index: {}]
  %s1 = inlined_call_operand.vmem [shape: f32[12,4], index: 1, kind: input, shape index: {}]
  %s2 = inlined_call_operand.vmem [shape: f32[12,4], index: 2, kind: input, shape index: {}]
  %s3 = inlined_call_operand.vmem [shape: f32[32,4], index: 3, kind: output, shape index: {}]
  %s4 = sld [smem:[#allocation0]]
  $region45: #{tpu_custom_call.1} parent=0
    _
  %s6 = ssub.s32 1, %s4
  %s7 = scalar_select 0, %s6, %s4
  loop: start=0, step=1, limit=4
  $region2: #{tpu_custom_call.1} parent=0 // loop_pre_header
    _
  $region3: #{tpu_custom_call.1} parent=0 // loop_header
    %s9 = sphi 0, %s13
    %p10 = scmp.ge.s32.totalorder %s9, 4
    %s19 = sphi 0, %s21
    %s22 = sphi 0, %s19
    %s23 = sphi 0, %s22
    %s39 = sphi 0, %s23
    %s43 = sphi 0, %s43
    %s45 = sphi 0, %s43
    %s46 = sphi 0, %s45
    %s60 = sphi 0, %s46
    %s64 = sphi 0, %s64
    %s66 = sphi 0, %s64
    %s67 = sphi 0, %s66
    %s81 = sphi 0, %s67
    %s87 = sphi 0, %s89
    %s90 = sphi 0, %s87
    %s91 = sphi 0, %s90
    %s107 = sphi 0, %s91
  $region4: #{tpu_custom_call.1} parent=0 // loop_header_branch
    %12 = sbr.rel (%p10) target = $region8
  $region5: #{tpu_custom_call.1} parent=0 // loop_body
    %s14 = ssub.s32 %s9, 1
    %s15 = ssub.s32 %s9, 2
    %s16 = sadd.s32 %s9, 1
    %s17 = ssub.s32 %s9, %s16
    %p18 = scmp.eq.s32.totalorder %s17, 0
    %s20 = sadd.s32 %s19, 1
    %s21 = scalar_select %p18, %s19, %s20
    %p24 = pneg %p18
    %p25 = scmp.eq.s32.totalorder %s9, 1
    %p26 = por %p24, %p25
    %p27 = scmp.ne.s32.totalorder %s19, %s22
    %p28 = scmp.eq.s32.totalorder %s9, 0
    %p29 = por %p27, %p28
    %p30 = scmp.ne.s32.totalorder %s19, %s22
    %p31 = scmp.eq.s32.totalorder %s14, 1
    %p32 = por %p30, %p31
    %p33 = scmp.ne.s32.totalorder %s22, %s23
    %p34 = scmp.eq.s32.totalorder %s14, 0
    %p35 = por %p33, %p34
    %p36 = scmp.ne.s32.totalorder %s22, %s23
    %p37 = scmp.eq.s32.totalorder %s15, 1
    %p38 = por %p36, %p37
    %p40 = scmp.ne.s32.totalorder %s23, %s39
    %p41 = scmp.eq.s32.totalorder %s15, 0
    %p42 = por %p40, %p41
    %s44 = sadd.s32 %s43, 1
    %p47 = scmp.eq.s32.totalorder %s9, 1
    %p48 = scmp.ne.s32.totalorder %s43, %s45
    %p49 = scmp.eq.s32.totalorder %s9, 0
    %p50 = por %p48, %p49
    %p51 = scmp.ne.s32.totalorder %s43, %s45
    %p52 = scmp.eq.s32.totalorder %s14, 1
    %p53 = por %p51, %p52
    %p54 = scmp.ne.s32.totalorder %s45, %s46
    %p55 = scmp.eq.s32.totalorder %s14, 0
    %p56 = por %p54, %p55
    %p57 = scmp.ne.s32.totalorder %s45, %s46
    %p58 = scmp.eq.s32.totalorder %s15, 1
    %p59 = por %p57, %p58
    %p61 = scmp.ne.s32.totalorder %s46, %s60
    %p62 = scmp.eq.s32.totalorder %s15, 0
    %p63 = por %p61, %p62
    %s65 = sadd.s32 %s64, 1
    %p68 = scmp.eq.s32.totalorder %s9, 1
    %p69 = scmp.ne.s32.totalorder %s64, %s66
    %p70 = scmp.eq.s32.totalorder %s9, 0
    %p71 = por %p69, %p70
    %p72 = scmp.ne.s32.totalorder %s64, %s66
    %p73 = scmp.eq.s32.totalorder %s14, 1
    %p74 = por %p72, %p73
    %p75 = scmp.ne.s32.totalorder %s66, %s67
    %p76 = scmp.eq.s32.totalorder %s14, 0
    %p77 = por %p75, %p76
    %p78 = scmp.ne.s32.totalorder %s66, %s67
    %p79 = scmp.eq.s32.totalorder %s15, 1
    %p80 = por %p78, %p79
    %p82 = scmp.ne.s32.totalorder %s67, %s81
    %p83 = scmp.eq.s32.totalorder %s15, 0
    %p84 = por %p82, %p83
    %s85 = ssub.s32 %s9, %s16
    %p86 = scmp.eq.s32.totalorder %s85, 0
    %s88 = sadd.s32 %s87, 1
    %s89 = scalar_select %p86, %s87, %s88
    %p92 = pneg %p86
    %p93 = scmp.eq.s32.totalorder %s9, 1
    %p94 = por %p92, %p93
    %p95 = scmp.ne.s32.totalorder %s87, %s90
    %p96 = scmp.eq.s32.totalorder %s9, 0
    %p97 = por %p95, %p96
    %p98 = scmp.ne.s32.totalorder %s87, %s90
    %p99 = scmp.eq.s32.totalorder %s14, 1
    %p100 = por %p98, %p99
    %p101 = scmp.ne.s32.totalorder %s90, %s91
    %p102 = scmp.eq.s32.totalorder %s14, 0
    %p103 = por %p101, %p102
    %p104 = scmp.ne.s32.totalorder %s90, %s91
    %p105 = scmp.eq.s32.totalorder %s15, 1
    %p106 = por %p104, %p105
    %p108 = scmp.ne.s32.totalorder %s91, %s107
    %p109 = scmp.eq.s32.totalorder %s15, 0
    %p110 = por %p108, %p109
    %p111 = scmp.le.s32.totalorder 1, %s9
    %p112 = scmp.lt.s32.totalorder %s9, 3
    %p113 = pnand %p111, %p112
    %p114 = pneg %p113
    // Predicated region
    $region9: #{tpu_custom_call.1} parent=5 // pred_check
      _
    $region10: #{tpu_custom_call.1} parent=5 // pred_check_branch
      %116 = sbr.rel (%p113) target = $region12
    $region11: #{tpu_custom_call.1} parent=5 // pred_region
      %s117 = ssub.s32 %s9, 1
      // Predicated region
      $region13: #{tpu_custom_call.1} parent=11 // pred_check
        %p118 = pneg %p56
      $region14: #{tpu_custom_call.1} parent=11 // pred_check_branch
        %120 = sbr.rel (%p118) target = $region16
      $region15: #{tpu_custom_call.1} parent=11 // pred_region
        _
      $region16: #{tpu_custom_call.1} parent=11 // pred_fallthru
        _
      // Predicated region
      $region17: #{tpu_custom_call.1} parent=11 // pred_check
        %p121 = pneg %p77
      $region18: #{tpu_custom_call.1} parent=11 // pred_check_branch
        %123 = sbr.rel (%p121) target = $region20
      $region19: #{tpu_custom_call.1} parent=11 // pred_region
        _
      $region20: #{tpu_custom_call.1} parent=11 // pred_fallthru
        _
    $region12: #{tpu_custom_call.1} parent=5 // pred_fallthru
      _
    %p124 = scmp.lt.s32.totalorder %s9, 2
    // Predicated region
    $region21: #{tpu_custom_call.1} parent=5 // pred_check
      %p125 = pneg %p124
    $region22: #{tpu_custom_call.1} parent=5 // pred_check_branch
      %127 = sbr.rel (%p125) target = $region24
    $region23: #{tpu_custom_call.1} parent=5 // pred_region
      // Predicated region
      $region25: #{tpu_custom_call.1} parent=23 // pred_check
        %p128 = pneg %p29
      $region26: #{tpu_custom_call.1} parent=23 // pred_check_branch
        %130 = sbr.rel (%p128) target = $region28
      $region27: #{tpu_custom_call.1} parent=23 // pred_region
        %s131 = smul.u32 2, %s9
        %p132 = scmp.lt.s32.totalorder %s131, 3
        %s133 = scalar_select %p132, %s131, 3
        %s134 = smul.addr %s133, 8
        %s135 = scalar_lea.vmem %s0, %s134
        %s136 = smul.u32 2, %s9
      $region28: #{tpu_custom_call.1} parent=23 // pred_fallthru
        _
    $region24: #{tpu_custom_call.1} parent=5 // pred_fallthru
      _
    %p137 = scmp.le.s32.totalorder 1, %s9
    %p138 = scmp.lt.s32.totalorder %s9, 3
    %p139 = pnand %p137, %p138
    %p140 = pneg %p139
    // Predicated region
    $region29: #{tpu_custom_call.1} parent=5 // pred_check
      _
    $region30: #{tpu_custom_call.1} parent=5 // pred_check_branch
      %142 = sbr.rel (%p139) target = $region32
    $region31: #{tpu_custom_call.1} parent=5 // pred_region
      %s143 = ssub.s32 %s9, 1
      %s144 = smul.u32 2, %s14
      %p145 = scmp.lt.s32.totalorder %s144, 3
      %s146 = scalar_select %p145, %s144, 3
      %s147 = smul.addr %s146, 8
      %s148 = scalar_lea.vmem %s0, %s147
      %p149 = pneg %p35
      %p150 = pneg %p32
      %p151 = pneg %p56
      %p152 = pneg %p53
      %p153 = pneg %p77
      %p154 = pneg %p74
      %p155 = pneg %p103
      %p156 = pneg %p100
      %s157 = smul.u32 2, %s14
      %p158 = scmp.lt.s32.totalorder %s157, 3
      %s159 = scalar_select %p158, %s157, 3
      %s160 = smul.addr %s159, 8
      %s161 = scalar_lea.vmem %s3, %s160
      %s162 = smul.u32 2, %s14
      %p163 = scmp.lt.s32.totalorder %s162, 3
      %s164 = scalar_select %p163, %s162, 3
      %s165 = smul.addr %s164, 8
      %s166 = scalar_lea.vmem %s0, %s165
      %s167 = smul.u32 2, %s14
      %s168 = smul.u32 2, %s14
      %p169 = scmp.lt.s32.totalorder %s168, 3
      %s170 = scalar_select %p169, %s168, 3
      %s171 = smul.addr %s170, 8
      %s172 = scalar_lea.vmem %s3, %s171
      %s173 = smul.u32 2, %s14
      %v174 = vlaneseq
      %v175 = vshrl.u32 %v174, 7
      %v176 = vadd.s32 %v175, 8
      %vm177 = vcmp.lt.s32.totalorder %v175, 0
      %v178 = vsub.s32 0, %v175
      %v179 = vsel %vm177, %v178, %v175
      %v180 = vshrl.u32 %v179, 4
      %v181 = vand.u32 %v179, 15
      %v182 = vsub.s32 0, %v181
      %v183 = vsel %vm177, %v182, %v181
      %vm184 = vcmp.lt.s32.totalorder %v176, 0
      %v185 = vsub.s32 0, %v176
      %v186 = vsel %vm184, %v185, %v176
      %v187 = vshrl.u32 %v186, 4
      %v188 = vand.u32 %v186, 15
      %v189 = vsub.s32 0, %v188
      %v190 = vsel %vm184, %v189, %v188
      %vm191 = vcmp.ne.s32.totalorder %v183, 0
      %vm192 = vcmp.ne.s32.totalorder %v190, 0
      %vm193 = vcmp.lt.s32.totalorder %v183, 0
      %vm194 = vcmp.lt.s32.totalorder %v190, 0
      %vm195 = vmand %vm193, %vm191
      %vm196 = vmand %vm194, %vm192
      %v197 = vadd.s32 %v183, 16
      %v198 = vadd.s32 %v190, 16
      %v199 = vsel %vm195, %v197, %v183
      %v200 = vsel %vm196, %v198, %v190
      %vm201 = vcmp.ne.s32.totalorder %v199, 0
      %vm202 = vcmp.ne.s32.totalorder %v200, 0
      %v203 = vsel %vm201, 1, 0
      %v204 = vsel %vm202, 1, 0
      %v205 = vcvt.s32.f32 %v203
      %v206 = vcvt.s32.f32 %v204
      %vm207 = vcmp.ne.s32.totalorder %v199, 15
      %vm208 = vcmp.ne.s32.totalorder %v200, 15
      %v209 = vsel %vm207, 1, 0
      %v210 = vsel %vm208, 1, 0
      %v211 = vcvt.s32.f32 %v209
      %v212 = vcvt.s32.f32 %v210
      %v213 = vld [vmem:[%s166] sm:$0xff]
      %v214 = vld [vmem:[%s166 + $0x8] sm:$0xff]
      %v215 = vrot.slane %v213, 7
      %v216 = vrot.slane %v214, 7
      %vm217 = vcmp.lt.s32.totalorder %v175, 1
      %v218 = vsel %vm217, %v215, %v216
      %v219 = vsel %vm217, %v216, %v215
      %v220 = vmul.f32 %v219, %v205
      %v221 = vmul.f32 %v218, %v206
      %v222 = vrot.slane %v213, 1
      %v223 = vrot.slane %v214, 1
      %vm224 = vcmp.lt.s32.totalorder %v175, 7
      %v225 = vsel %vm224, %v222, %v223
      %v226 = vsel %vm224, %v223, %v222
      %v227 = vmul.f32 %v225, %v211
      %v228 = vmul.f32 %v226, %v212
      %v229 = vld [vmem:[%s1 + $0x4] sm:$0xf]
      %v230 = vld [vmem:[%s1] sm:$0xf]
      %vm231 = vcmask 31744
      %v233 = vsel %vm231, %v220, 0
      %v236 = vsel %vm231, %v221, 0
      %vm238 = vcmask 1043456
      %v240 = vsel %vm238, %v230, 0
      %242 = vmatprep.subr.mxu0 0.0
      %243 = vmatpush1.msra.mxu0 %v240
      %244 = vmatprep.subr.mxu0 0.0
      %245 = vmatpush1.msra.mxu0 0.0
      %246 = vmatprep.subr.mxu0 0.0
      %247 = vmatpush1.msra.mxu0 0.0
      %248 = vmatprep.subr.mxu0 0.0
      %249 = vmatpush1.msra.mxu0 0.0
      %250 = vmatprep.subr.mxu0 0.0
      %251 = vmatpush1.msra.mxu0 0.0
      %252 = vmatprep.subr.mxu0 0.0
      %253 = vmatpush1.msra.mxu0 0.0
      %254 = vmatprep.subr.mxu0 0.0
      %255 = vmatpush1.msra.mxu0 0.0
      %256 = vmatprep.subr.mxu0 0.0
      %257 = vmatpush1.msra.mxu0 0.0
      %258 = vmatprep.subr.mxu0 0.0
      %259 = vmatpush1.msra.mxu0 0.0
      %260 = vmatprep.subr.mxu0 0.0
      %261 = vmatpush1.msra.mxu0 0.0
      %262 = vmatprep.subr.mxu0 0.0
      %263 = vmatpush1.msra.mxu0 0.0
      %264 = vmatprep.subr.mxu0 0.0
      %265 = vmatpush1.msra.mxu0 0.0
      %266 = vmatprep.subr.mxu0 0.0
      %267 = vmatpush1.msra.mxu0 0.0
      %268 = vmatprep.subr.mxu0 0.0
      %269 = vmatpush1.msra.mxu0 0.0
      %270 = vmatprep.subr.mxu0 0.0
      %271 = vmatpush1.msra.mxu0 0.0
      %272 = vmatprep.subr.mxu0 0.0
      %273 = vmatpush1.msra.mxu0 0.0
      %274 = vmatprep.subr.mxu0 0.0
      %275 = vmatpush1.msra.mxu0 0.0
      %276 = vmatprep.subr.mxu0 0.0
      %277 = vmatpush1.msra.mxu0 0.0
      %278 = vmatprep.subr.mxu0 0.0
      %279 = vmatpush1.msra.mxu0 0.0
      %280 = vmatprep.subr.mxu0 0.0
      %281 = vmatpush1.msra.mxu0 0.0
      %282 = vmatprep.subr.mxu0 0.0
      %283 = vmatpush1.msra.mxu0 0.0
      %284 = vmatprep.subr.mxu0 0.0
      %285 = vmatpush1.msra.mxu0 0.0
      %286 = vmatprep.subr.mxu0 0.0
      %287 = vmatpush1.msra.mxu0 0.0
      %288 = vmatprep.subr.mxu0 0.0
      %289 = vmatpush1.msra.mxu0 0.0
      %290 = vmatprep.subr.mxu0 0.0
      %291 = vmatpush1.msra.mxu0 0.0
      %292 = vmatprep.subr.mxu0 0.0
      %293 = vmatpush1.msra.mxu0 0.0
      %294 = vmatprep.subr.mxu0 0.0
      %295 = vmatpush1.msra.mxu0 0.0
      %296 = vmatprep.subr.mxu0 0.0
      %297 = vmatpush1.msra.mxu0 0.0
      %298 = vmatprep.subr.mxu0 0.0
      %299 = vmatpush1.msra.mxu0 0.0
      %300 = vmatprep.subr.mxu0 0.0
      %301 = vmatpush1.msra.mxu0 0.0
      %302 = vmatprep.subr.mxu0 0.0
      %303 = vmatpush1.msra.mxu0 0.0
      %304 = vmatprep.subr.mxu0 0.0
      %305 = vmatpush1.msra.mxu0 0.0
      %306 = vmatprep.mubr.f32.mxu0 0.0
      %307 = vmatmul.mubr.f32.gmra.mrb[0].mxu0 %v233
      %v308 = vpop.f32.mrb[0].mxu0
      %v309 = vadd.f32 0.0, %v308
      %v310 = vpop.f32.mrb[0].mxu0
      %311 = vmatprep.mubr.f32.mxu0 0.0
      %312 = vmatmul.mubr.f32.gmra.mrb[0].mxu0 %v236
      %v313 = vpop.f32.mrb[0].mxu0
      %v314 = vadd.f32 0.0, %v313
      %v315 = vpop.f32.mrb[0].mxu0
      %316 = vdwg.mxu0
      %v318 = vsel %vm231, %v213, 0
      %v321 = vsel %vm231, %v214, 0
      %v324 = vsel %vm238, %v229, 0
      %326 = vmatprep.subr.mxu0 0.0
      %327 = vmatpush1.msra.mxu0 %v324
      %328 = vmatprep.subr.mxu0 0.0
      %329 = vmatpush1.msra.mxu0 0.0
      %330 = vmatprep.subr.mxu0 0.0
      %331 = vmatpush1.msra.mxu0 0.0
      %332 = vmatprep.subr.mxu0 0.0
      %333 = vmatpush1.msra.mxu0 0.0
      %334 = vmatprep.subr.mxu0 0.0
      %335 = vmatpush1.msra.mxu0 0.0
      %336 = vmatprep.subr.mxu0 0.0
      %337 = vmatpush1.msra.mxu0 0.0
      %338 = vmatprep.subr.mxu0 0.0
      %339 = vmatpush1.msra.mxu0 0.0
      %340 = vmatprep.subr.mxu0 0.0
      %341 = vmatpush1.msra.mxu0 0.0
      %342 = vmatprep.subr.mxu0 0.0
      %343 = vmatpush1.msra.mxu0 0.0
      %344 = vmatprep.subr.mxu0 0.0
      %345 = vmatpush1.msra.mxu0 0.0
      %346 = vmatprep.subr.mxu0 0.0
      %347 = vmatpush1.msra.mxu0 0.0
      %348 = vmatprep.subr.mxu0 0.0
      %349 = vmatpush1.msra.mxu0 0.0
      %350 = vmatprep.subr.mxu0 0.0
      %351 = vmatpush1.msra.mxu0 0.0
      %352 = vmatprep.subr.mxu0 0.0
      %353 = vmatpush1.msra.mxu0 0.0
      %354 = vmatprep.subr.mxu0 0.0
      %355 = vmatpush1.msra.mxu0 0.0
      %356 = vmatprep.subr.mxu0 0.0
      %357 = vmatpush1.msra.mxu0 0.0
      %358 = vmatprep.subr.mxu0 0.0
      %359 = vmatpush1.msra.mxu0 0.0
      %360 = vmatprep.subr.mxu0 0.0
      %361 = vmatpush1.msra.mxu0 0.0
      %362 = vmatprep.subr.mxu0 0.0
      %363 = vmatpush1.msra.mxu0 0.0
      %364 = vmatprep.subr.mxu0 0.0
      %365 = vmatpush1.msra.mxu0 0.0
      %366 = vmatprep.subr.mxu0 0.0
      %367 = vmatpush1.msra.mxu0 0.0
      %368 = vmatprep.subr.mxu0 0.0
      %369 = vmatpush1.msra.mxu0 0.0
      %370 = vmatprep.subr.mxu0 0.0
      %371 = vmatpush1.msra.mxu0 0.0
      %372 = vmatprep.subr.mxu0 0.0
      %373 = vmatpush1.msra.mxu0 0.0
      %374 = vmatprep.subr.mxu0 0.0
      %375 = vmatpush1.msra.mxu0 0.0
      %376 = vmatprep.subr.mxu0 0.0
      %377 = vmatpush1.msra.mxu0 0.0
      %378 = vmatprep.subr.mxu0 0.0
      %379 = vmatpush1.msra.mxu0 0.0
      %380 = vmatprep.subr.mxu0 0.0
      %381 = vmatpush1.msra.mxu0 0.0
      %382 = vmatprep.subr.mxu0 0.0
      %383 = vmatpush1.msra.mxu0 0.0
      %384 = vmatprep.subr.mxu0 0.0
      %385 = vmatpush1.msra.mxu0 0.0
      %386 = vmatprep.subr.mxu0 0.0
      %387 = vmatpush1.msra.mxu0 0.0
      %388 = vmatprep.subr.mxu0 0.0
      %389 = vmatpush1.msra.mxu0 0.0
      %390 = vmatprep.mubr.f32.mxu0 0.0
      %391 = vmatmul.mubr.f32.gmra.mrb[0].mxu0 %v318
      %v392 = vpop.f32.mrb[0].mxu0
      %v393 = vadd.f32 %v309, %v392
      %v394 = vpop.f32.mrb[0].mxu0
      %395 = vmatprep.mubr.f32.mxu0 0.0
      %396 = vmatmul.mubr.f32.gmra.mrb[0].mxu0 %v321
      %v397 = vpop.f32.mrb[0].mxu0
      %v398 = vadd.f32 %v314, %v397
      %v399 = vpop.f32.mrb[0].mxu0
      %400 = vdwg.mxu0
      %v401 = vld [vmem:[%s1 + $0x8] sm:$0xf]
      %v403 = vsel %vm231, %v227, 0
      %v406 = vsel %vm231, %v228, 0
      %v409 = vsel %vm238, %v401, 0
      %411 = vmatprep.subr.mxu0 0.0
      %412 = vmatpush1.msra.mxu0 %v409
      %413 = vmatprep.subr.mxu0 0.0
      %414 = vmatpush1.msra.mxu0 0.0
      %415 = vmatprep.subr.mxu0 0.0
      %416 = vmatpush1.msra.mxu0 0.0
      %417 = vmatprep.subr.mxu0 0.0
      %418 = vmatpush1.msra.mxu0 0.0
      %419 = vmatprep.subr.mxu0 0.0
      %420 = vmatpush1.msra.mxu0 0.0
      %421 = vmatprep.subr.mxu0 0.0
      %422 = vmatpush1.msra.mxu0 0.0
      %423 = vmatprep.subr.mxu0 0.0
      %424 = vmatpush1.msra.mxu0 0.0
      %425 = vmatprep.subr.mxu0 0.0
      %426 = vmatpush1.msra.mxu0 0.0
      %427 = vmatprep.subr.mxu0 0.0
      %428 = vmatpush1.msra.mxu0 0.0
      %429 = vmatprep.subr.mxu0 0.0
      %430 = vmatpush1.msra.mxu0 0.0
      %431 = vmatprep.subr.mxu0 0.0
      %432 = vmatpush1.msra.mxu0 0.0
      %433 = vmatprep.subr.mxu0 0.0
      %434 = vmatpush1.msra.mxu0 0.0
      %435 = vmatprep.subr.mxu0 0.0
      %436 = vmatpush1.msra.mxu0 0.0
      %437 = vmatprep.subr.mxu0 0.0
      %438 = vmatpush1.msra.mxu0 0.0
      %439 = vmatprep.subr.mxu0 0.0
      %440 = vmatpush1.msra.mxu0 0.0
      %441 = vmatprep.subr.mxu0 0.0
      %442 = vmatpush1.msra.mxu0 0.0
      %443 = vmatprep.subr.mxu0 0.0
      %444 = vmatpush1.msra.mxu0 0.0
      %445 = vmatprep.subr.mxu0 0.0
      %446 = vmatpush1.msra.mxu0 0.0
      %447 = vmatprep.subr.mxu0 0.0
      %448 = vmatpush1.msra.mxu0 0.0
      %449 = vmatprep.subr.mxu0 0.0
      %450 = vmatpush1.msra.mxu0 0.0
      %451 = vmatprep.subr.mxu0 0.0
      %452 = vmatpush1.msra.mxu0 0.0
      %453 = vmatprep.subr.mxu0 0.0
      %454 = vmatpush1.msra.mxu0 0.0
      %455 = vmatprep.subr.mxu0 0.0
      %456 = vmatpush1.msra.mxu0 0.0
      %457 = vmatprep.subr.mxu0 0.0
      %458 = vmatpush1.msra.mxu0 0.0
      %459 = vmatprep.subr.mxu0 0.0
      %460 = vmatpush1.msra.mxu0 0.0
      %461 = vmatprep.subr.mxu0 0.0
      %462 = vmatpush1.msra.mxu0 0.0
      %463 = vmatprep.subr.mxu0 0.0
      %464 = vmatpush1.msra.mxu0 0.0
      %465 = vmatprep.subr.mxu0 0.0
      %466 = vmatpush1.msra.mxu0 0.0
      %467 = vmatprep.subr.mxu0 0.0
      %468 = vmatpush1.msra.mxu0 0.0
      %469 = vmatprep.subr.mxu0 0.0
      %470 = vmatpush1.msra.mxu0 0.0
      %471 = vmatprep.subr.mxu0 0.0
      %472 = vmatpush1.msra.mxu0 0.0
      %473 = vmatprep.subr.mxu0 0.0
      %474 = vmatpush1.msra.mxu0 0.0
      %475 = vmatprep.mubr.f32.mxu0 0.0
      %476 = vmatmul.mubr.f32.gmra.mrb[0].mxu0 %v403
      %v477 = vpop.f32.mrb[0].mxu0
      %v478 = vadd.f32 0.0, %v477
      %v479 = vpop.f32.mrb[0].mxu0
      %480 = vmatprep.mubr.f32.mxu0 0.0
      %481 = vmatmul.mubr.f32.gmra.mrb[0].mxu0 %v406
      %v482 = vpop.f32.mrb[0].mxu0
      %v483 = vadd.f32 0.0, %v482
      %v484 = vpop.f32.mrb[0].mxu0
      %485 = vdwg.mxu0
      %v486 = vadd.f32 %v393, %v478
      %v487 = vadd.f32 %v398, %v483
      %v488 = vmax.f32 %v486, 0.0
      %v489 = vmax.f32 %v487, 0.0
      %v490 = vrot.slane %v488, 7
      %v491 = vrot.slane %v489, 7
      %v492 = vsel %vm217, %v490, %v491
      %v493 = vsel %vm217, %v491, %v490
      %v494 = vmul.f32 %v493, %v205
      %v495 = vmul.f32 %v492, %v206
      %v496 = vrot.slane %v488, 1
      %v497 = vrot.slane %v489, 1
      %v498 = vsel %vm224, %v496, %v497
      %v499 = vsel %vm224, %v497, %v496
      %v500 = vmul.f32 %v498, %v211
      %v501 = vmul.f32 %v499, %v212
      %v502 = vld [vmem:[%s2 + $0x4] sm:$0xf]
      %v503 = vld [vmem:[%s2] sm:$0xf]
      %v505 = vsel %vm231, %v494, 0
      %v508 = vsel %vm231, %v495, 0
      %v511 = vsel %vm238, %v503, 0
      %513 = vmatprep.subr.mxu0 0.0
      %514 = vmatpush1.msra.mxu0 %v511
      %515 = vmatprep.subr.mxu0 0.0
      %516 = vmatpush1.msra.mxu0 0.0
      %517 = vmatprep.subr.mxu0 0.0
      %518 = vmatpush1.msra.mxu0 0.0
      %519 = vmatprep.subr.mxu0 0.0
      %520 = vmatpush1.msra.mxu0 0.0
      %521 = vmatprep.subr.mxu0 0.0
      %522 = vmatpush1.msra.mxu0 0.0
      %523 = vmatprep.subr.mxu0 0.0
      %524 = vmatpush1.msra.mxu0 0.0
      %525 = vmatprep.subr.mxu0 0.0
      %526 = vmatpush1.msra.mxu0 0.0
      %527 = vmatprep.subr.mxu0 0.0
      %528 = vmatpush1.msra.mxu0 0.0
      %529 = vmatprep.subr.mxu0 0.0
      %530 = vmatpush1.msra.mxu0 0.0
      %531 = vmatprep.subr.mxu0 0.0
      %532 = vmatpush1.msra.mxu0 0.0
      %533 = vmatprep.subr.mxu0 0.0
      %534 = vmatpush1.msra.mxu0 0.0
      %535 = vmatprep.subr.mxu0 0.0
      %536 = vmatpush1.msra.mxu0 0.0
      %537 = vmatprep.subr.mxu0 0.0
      %538 = vmatpush1.msra.mxu0 0.0
      %539 = vmatprep.subr.mxu0 0.0
      %540 = vmatpush1.msra.mxu0 0.0
      %541 = vmatprep.subr.mxu0 0.0
      %542 = vmatpush1.msra.mxu0 0.0
      %543 = vmatprep.subr.mxu0 0.0
      %544 = vmatpush1.msra.mxu0 0.0
      %545 = vmatprep.subr.mxu0 0.0
      %546 = vmatpush1.msra.mxu0 0.0
      %547 = vmatprep.subr.mxu0 0.0
      %548 = vmatpush1.msra.mxu0 0.0
      %549 = vmatprep.subr.mxu0 0.0
      %550 = vmatpush1.msra.mxu0 0.0
      %551 = vmatprep.subr.mxu0 0.0
      %552 = vmatpush1.msra.mxu0 0.0
      %553 = vmatprep.subr.mxu0 0.0
      %554 = vmatpush1.msra.mxu0 0.0
      %555 = vmatprep.subr.mxu0 0.0
      %556 = vmatpush1.msra.mxu0 0.0
      %557 = vmatprep.subr.mxu0 0.0
      %558 = vmatpush1.msra.mxu0 0.0
      %559 = vmatprep.subr.mxu0 0.0
      %560 = vmatpush1.msra.mxu0 0.0
      %561 = vmatprep.subr.mxu0 0.0
      %562 = vmatpush1.msra.mxu0 0.0
      %563 = vmatprep.subr.mxu0 0.0
      %564 = vmatpush1.msra.mxu0 0.0
      %565 = vmatprep.subr.mxu0 0.0
      %566 = vmatpush1.msra.mxu0 0.0
      %567 = vmatprep.subr.mxu0 0.0
      %568 = vmatpush1.msra.mxu0 0.0
      %569 = vmatprep.subr.mxu0 0.0
      %570 = vmatpush1.msra.mxu0 0.0
      %571 = vmatprep.subr.mxu0 0.0
      %572 = vmatpush1.msra.mxu0 0.0
      %573 = vmatprep.subr.mxu0 0.0
      %574 = vmatpush1.msra.mxu0 0.0
      %575 = vmatprep.subr.mxu0 0.0
      %576 = vmatpush1.msra.mxu0 0.0
      %577 = vmatprep.mubr.f32.mxu0 0.0
      %578 = vmatmul.mubr.f32.gmra.mrb[0].mxu0 %v505
      %v579 = vpop.f32.mrb[0].mxu0
      %v580 = vadd.f32 0.0, %v579
      %v581 = vpop.f32.mrb[0].mxu0
      %582 = vmatprep.mubr.f32.mxu0 0.0
      %583 = vmatmul.mubr.f32.gmra.mrb[0].mxu0 %v508
      %v584 = vpop.f32.mrb[0].mxu0
      %v585 = vadd.f32 0.0, %v584
      %v586 = vpop.f32.mrb[0].mxu0
      %587 = vdwg.mxu0
      %v589 = vsel %vm231, %v488, 0
      %v592 = vsel %vm231, %v489, 0
      %v595 = vsel %vm238, %v502, 0
      %597 = vmatprep.subr.mxu0 0.0
      %598 = vmatpush1.msra.mxu0 %v595
      %599 = vmatprep.subr.mxu0 0.0
      %600 = vmatpush1.msra.mxu0 0.0
      %601 = vmatprep.subr.mxu0 0.0
      %602 = vmatpush1.msra.mxu0 0.0
      %603 = vmatprep.subr.mxu0 0.0
      %604 = vmatpush1.msra.mxu0 0.0
      %605 = vmatprep.subr.mxu0 0.0
      %606 = vmatpush1.msra.mxu0 0.0
      %607 = vmatprep.subr.mxu0 0.0
      %608 = vmatpush1.msra.mxu0 0.0
      %609 = vmatprep.subr.mxu0 0.0
      %610 = vmatpush1.msra.mxu0 0.0
      %611 = vmatprep.subr.mxu0 0.0
      %612 = vmatpush1.msra.mxu0 0.0
      %613 = vmatprep.subr.mxu0 0.0
      %614 = vmatpush1.msra.mxu0 0.0
      %615 = vmatprep.subr.mxu0 0.0
      %616 = vmatpush1.msra.mxu0 0.0
      %617 = vmatprep.subr.mxu0 0.0
      %618 = vmatpush1.msra.mxu0 0.0
      %619 = vmatprep.subr.mxu0 0.0
      %620 = vmatpush1.msra.mxu0 0.0
      %621 = vmatprep.subr.mxu0 0.0
      %622 = vmatpush1.msra.mxu0 0.0
      %623 = vmatprep.subr.mxu0 0.0
      %624 = vmatpush1.msra.mxu0 0.0
      %625 = vmatprep.subr.mxu0 0.0
      %626 = vmatpush1.msra.mxu0 0.0
      %627 = vmatprep.subr.mxu0 0.0
      %628 = vmatpush1.msra.mxu0 0.0
      %629 = vmatprep.subr.mxu0 0.0
      %630 = vmatpush1.msra.mxu0 0.0
      %631 = vmatprep.subr.mxu0 0.0
      %632 = vmatpush1.msra.mxu0 0.0
      %633 = vmatprep.subr.mxu0 0.0
      %634 = vmatpush1.msra.mxu0 0.0
      %635 = vmatprep.subr.mxu0 0.0
      %636 = vmatpush1.msra.mxu0 0.0
      %637 = vmatprep.subr.mxu0 0.0
      %638 = vmatpush1.msra.mxu0 0.0
      %639 = vmatprep.subr.mxu0 0.0
      %640 = vmatpush1.msra.mxu0 0.0
      %641 = vmatprep.subr.mxu0 0.0
      %642 = vmatpush1.msra.mxu0 0.0
      %643 = vmatprep.subr.mxu0 0.0
      %644 = vmatpush1.msra.mxu0 0.0
      %645 = vmatprep.subr.mxu0 0.0
      %646 = vmatpush1.msra.mxu0 0.0
      %647 = vmatprep.subr.mxu0 0.0
      %648 = vmatpush1.msra.mxu0 0.0
      %649 = vmatprep.subr.mxu0 0.0
      %650 = vmatpush1.msra.mxu0 0.0
      %651 = vmatprep.subr.mxu0 0.0
      %652 = vmatpush1.msra.mxu0 0.0
      %653 = vmatprep.subr.mxu0 0.0
      %654 = vmatpush1.msra.mxu0 0.0
      %655 = vmatprep.subr.mxu0 0.0
      %656 = vmatpush1.msra.mxu0 0.0
      %657 = vmatprep.subr.mxu0 0.0
      %658 = vmatpush1.msra.mxu0 0.0
      %659 = vmatprep.subr.mxu0 0.0
      %660 = vmatpush1.msra.mxu0 0.0
      %661 = vmatprep.mubr.f32.mxu0 0.0
      %662 = vmatmul.mubr.f32.gmra.mrb[0].mxu0 %v589
      %v663 = vpop.f32.mrb[0].mxu0
      %v664 = vadd.f32 %v580, %v663
      %v665 = vpop.f32.mrb[0].mxu0
      %666 = vmatprep.mubr.f32.mxu0 0.0
      %667 = vmatmul.mubr.f32.gmra.mrb[0].mxu0 %v592
      %v668 = vpop.f32.mrb[0].mxu0
      %v669 = vadd.f32 %v585, %v668
      %v670 = vpop.f32.mrb[0].mxu0
      %671 = vdwg.mxu0
      %v672 = vld [vmem:[%s2 + $0x8] sm:$0xf]
      %v674 = vsel %vm231, %v500, 0
      %v677 = vsel %vm231, %v501, 0
      %v680 = vsel %vm238, %v672, 0
      %682 = vmatprep.subr.mxu0 0.0
      %683 = vmatpush1.msra.mxu0 %v680
      %684 = vmatprep.subr.mxu0 0.0
      %685 = vmatpush1.msra.mxu0 0.0
      %686 = vmatprep.subr.mxu0 0.0
      %687 = vmatpush1.msra.mxu0 0.0
      %688 = vmatprep.subr.mxu0 0.0
      %689 = vmatpush1.msra.mxu0 0.0
      %690 = vmatprep.subr.mxu0 0.0
      %691 = vmatpush1.msra.mxu0 0.0
      %692 = vmatprep.subr.mxu0 0.0
      %693 = vmatpush1.msra.mxu0 0.0
      %694 = vmatprep.subr.mxu0 0.0
      %695 = vmatpush1.msra.mxu0 0.0
      %696 = vmatprep.subr.mxu0 0.0
      %697 = vmatpush1.msra.mxu0 0.0
      %698 = vmatprep.subr.mxu0 0.0
      %699 = vmatpush1.msra.mxu0 0.0
      %700 = vmatprep.subr.mxu0 0.0
      %701 = vmatpush1.msra.mxu0 0.0
      %702 = vmatprep.subr.mxu0 0.0
      %703 = vmatpush1.msra.mxu0 0.0
      %704 = vmatprep.subr.mxu0 0.0
      %705 = vmatpush1.msra.mxu0 0.0
      %706 = vmatprep.subr.mxu0 0.0
      %707 = vmatpush1.msra.mxu0 0.0
      %708 = vmatprep.subr.mxu0 0.0
      %709 = vmatpush1.msra.mxu0 0.0
      %710 = vmatprep.subr.mxu0 0.0
      %711 = vmatpush1.msra.mxu0 0.0
      %712 = vmatprep.subr.mxu0 0.0
      %713 = vmatpush1.msra.mxu0 0.0
      %714 = vmatprep.subr.mxu0 0.0
      %715 = vmatpush1.msra.mxu0 0.0
      %716 = vmatprep.subr.mxu0 0.0
      %717 = vmatpush1.msra.mxu0 0.0
      %718 = vmatprep.subr.mxu0 0.0
      %719 = vmatpush1.msra.mxu0 0.0
      %720 = vmatprep.subr.mxu0 0.0
      %721 = vmatpush1.msra.mxu0 0.0
      %722 = vmatprep.subr.mxu0 0.0
      %723 = vmatpush1.msra.mxu0 0.0
      %724 = vmatprep.subr.mxu0 0.0
      %725 = vmatpush1.msra.mxu0 0.0
      %726 = vmatprep.subr.mxu0 0.0
      %727 = vmatpush1.msra.mxu0 0.0
      %728 = vmatprep.subr.mxu0 0.0
      %729 = vmatpush1.msra.mxu0 0.0
      %730 = vmatprep.subr.mxu0 0.0
      %731 = vmatpush1.msra.mxu0 0.0
      %732 = vmatprep.subr.mxu0 0.0
      %733 = vmatpush1.msra.mxu0 0.0
      %734 = vmatprep.subr.mxu0 0.0
      %735 = vmatpush1.msra.mxu0 0.0
      %736 = vmatprep.subr.mxu0 0.0
      %737 = vmatpush1.msra.mxu0 0.0
      %738 = vmatprep.subr.mxu0 0.0
      %739 = vmatpush1.msra.mxu0 0.0
      %740 = vmatprep.subr.mxu0 0.0
      %741 = vmatpush1.msra.mxu0 0.0
      %742 = vmatprep.subr.mxu0 0.0
      %743 = vmatpush1.msra.mxu0 0.0
      %744 = vmatprep.subr.mxu0 0.0
      %745 = vmatpush1.msra.mxu0 0.0
      %746 = vmatprep.mubr.f32.mxu0 0.0
      %747 = vmatmul.mubr.f32.gmra.mrb[0].mxu0 %v674
      %v748 = vpop.f32.mrb[0].mxu0
      %v749 = vadd.f32 0.0, %v748
      %v750 = vpop.f32.mrb[0].mxu0
      %751 = vmatprep.mubr.f32.mxu0 0.0
      %752 = vmatmul.mubr.f32.gmra.mrb[0].mxu0 %v677
      %v753 = vpop.f32.mrb[0].mxu0
      %v754 = vadd.f32 0.0, %v753
      %v755 = vpop.f32.mrb[0].mxu0
      %756 = vdwg.mxu0
      %v757 = vadd.f32 %v664, %v749
      %v758 = vadd.f32 %v669, %v754
      %v759 = vadd.f32 %v757, %v213
      %v760 = vadd.f32 %v758, %v214
      %v761 = vmax.f32 %v759, 0.0
      %v762 = vmax.f32 %v760, 0.0
      %763 = vst.msk [vmem:[%s172] sm:$0xff] %vm231, %v761
      %764 = vst.msk [vmem:[%s172 + $0x8] sm:$0xff] %vm231, %v762
      %s765 = smul.u32 2, %s14
      %p766 = scmp.lt.s32.totalorder %s765, 3
      %s767 = scalar_select %p766, %s765, 3
      %s768 = smul.addr %s767, 8
      %s769 = scalar_lea.vmem %s3, %s768
      // Predicated region
      $region33: #{tpu_custom_call.1} parent=31 // pred_check
        %p770 = pneg %p100
      $region34: #{tpu_custom_call.1} parent=31 // pred_check_branch
        %772 = sbr.rel (%p770) target = $region36
      $region35: #{tpu_custom_call.1} parent=31 // pred_region
        %s773 = smul.u32 2, %s14
      $region36: #{tpu_custom_call.1} parent=31 // pred_fallthru
        _
    $region32: #{tpu_custom_call.1} parent=5 // pred_fallthru
      _
    %p774 = scmp.le.s32.totalorder 2, %s9
    // Predicated region
    $region37: #{tpu_custom_call.1} parent=5 // pred_check
      %p775 = pneg %p774
    $region38: #{tpu_custom_call.1} parent=5 // pred_check_branch
      %777 = sbr.rel (%p775) target = $region40
    $region39: #{tpu_custom_call.1} parent=5 // pred_region
      %s778 = ssub.s32 %s9, 2
      // Predicated region
      $region41: #{tpu_custom_call.1} parent=39 // pred_check
        %p779 = pneg %p106
      $region42: #{tpu_custom_call.1} parent=39 // pred_check_branch
        %781 = sbr.rel (%p779) target = $region44
      $region43: #{tpu_custom_call.1} parent=39 // pred_region
        %s782 = smul.u32 2, %s15
        %p783 = scmp.lt.s32.totalorder %s782, 3
        %s784 = scalar_select %p783, %s782, 3
        %s785 = smul.addr %s784, 8
        %s786 = scalar_lea.vmem %s3, %s785
      $region44: #{tpu_custom_call.1} parent=39 // pred_fallthru
        _
    $region40: #{tpu_custom_call.1} parent=5 // pred_fallthru
      _
  $region6: #{tpu_custom_call.1} parent=0 // loop_footer
    %s13 = sadd.s32 1, %s9
  $region7: #{tpu_custom_call.1} parent=0 // loop_footer_branch
    %8 = sbr.rel target = $region3
  $region8: #{tpu_custom_call.1} parent=0 // loop_exit
    _

</llo_original>
